<compile_context>
chip_gen: v7x
topology: tpu7x:2x2x1
jax: 0.10.0
libtpu: 0.0.40
codegen_flags: <defaults>
</compile_context>

<pallas_src>
import functools

import jax
import jax.numpy as jnp
from jax.experimental import pallas as pl
from jax.experimental.pallas import tpu as pltpu


def _head_kernel(hidden_ref, mask_ref, counts_ref, w_ref, b_ref, out_ref,
                 acc_ref, *, seq_len, s_tile):
    # hidden_ref: (B_t, S_t, H)   mask_ref: (B_t, 1, S_t)  counts_ref: (B_t, 1, 1)
    # w_ref: (H, C)   b_ref: (1, C)   out_ref: (B_t, 1, C)
    # acc_ref: (B_t, H) f32 scratch
    s = pl.program_id(1)

    @pl.when(s == 0)
    def _():
        acc_ref[...] = jnp.zeros_like(acc_ref)

    h = hidden_ref[...]                                # (B_t, S_t, H)
    m = mask_ref[...]                                  # (B_t, 1, S_t), same dtype as h

    if seq_len % s_tile != 0:
        # Ragged final S-tile: out-of-range tail contents are unspecified (could
        # be NaN). Zero BOTH the mask and the hidden tile with an iota validity
        # mask — mask-multiply alone would give 0*NaN=NaN.
        base = s * s_tile
        pos_m = base + jax.lax.broadcasted_iota(jnp.int32, (1, 1, s_tile), 2)
        pos_h = base + jax.lax.broadcasted_iota(jnp.int32, (1, s_tile, 1), 1)
        m = jnp.where(pos_m < seq_len, m, jnp.zeros_like(m))
        h = jnp.where(pos_h < seq_len, h, jnp.zeros_like(h))

    # MeanPooling numerator: masked sum over S as an MXU batched contraction
    #   (B_t, 1, S_t) @ (B_t, S_t, H) -> (B_t, 1, H), accumulated in f32.
    acc_ref[...] += jnp.einsum("bqs,bsh->bqh", m, h,
                               preferred_element_type=jnp.float32)[:, 0, :]

    @pl.when(s == pl.num_programs(1) - 1)
    def _():
        # MeanPooling denominator (precomputed token count), torch.clamp(min=1e-9).
        denom = jnp.maximum(counts_ref[...][:, :, 0], 1e-9)     # (B_t, 1)
        mean = acc_ref[...] / denom                             # (B_t, H)
        # Dropout(p=0.2) is identity in eval mode (inference forward pass).
        logits = jnp.dot(mean, w_ref[...],
                         preferred_element_type=jnp.float32) + b_ref[...]   # (B_t, C)
        # LogSoftmax(dim=-1), max-subtracted for stability.
        mx = jnp.max(logits, axis=-1, keepdims=True)
        z = logits - mx
        lse = jnp.log(jnp.sum(jnp.exp(z), axis=-1, keepdims=True))
        out_ref[...] = (z - lse)[:, None, :].astype(out_ref.dtype)


def model_head(last_hidden_state, attention_mask, fc_weight, fc_bias,
               *, s_tile=None):
    """last_hidden_state: (B, S, H) bf16/f32, attention_mask: (B, S),
       fc_weight: (H, C) f32, fc_bias: (C,) f32 -> (B, C) f32 log-probs."""
    B, S, H = last_hidden_state.shape
    C = fc_weight.shape[-1]
    dt = last_hidden_state.dtype
    itemsize = jnp.dtype(dt).itemsize

    # Batch tile: keep >=2 programs on the parallel axis whenever B >= 2 so the
    # v7x megacore actually splits work, and never exceed 8 rows per step.
    b_t = min(8, max(1, B // 2)) if B > 1 else 1

    # Sequence tile: largest multiple of 128 (capped at 1024 — HBM-efficiency
    # plateau) whose double-buffered hidden+mask stream fits ~24 MiB.
    stream_budget = 24 * 1024 * 1024
    per_token = b_t * (H + 1) * itemsize                  # hidden + mask, one buffer
    max_tok = max(128, (stream_budget // (2 * per_token)) // 128 * 128)
    s_cap = min(1024, max_tok)
    if s_tile is not None and s_tile < S:
        assert s_tile % 128 == 0
        s_t = s_tile
    else:
        s_t = S if S <= s_cap else s_cap

    grid = (pl.cdiv(B, b_t), pl.cdiv(S, s_t))

    # Mask streamed in the hidden dtype (0/1 exact in bf16); token counts are a
    # tiny (B,) reduce precomputed once here (removes the in-loop lane reduce).
    mask3 = attention_mask.astype(dt).reshape(B, 1, S)
    counts = jnp.sum(attention_mask.astype(jnp.float32), axis=-1).reshape(B, 1, 1)
    weight = fc_weight.astype(jnp.float32)
    bias2d = fc_bias.reshape(1, C).astype(jnp.float32)

    # Explicit VMEM limit: cover the double-buffered streams + resident operands
    # with margin; >=32 MiB (beats v5e's 16 MiB scoped default), <=48 MiB (safe
    # inside v7x's 64 MiB physical VMEM).
    working = (2 * b_t * s_t * H * itemsize          # hidden stream (double buffer)
               + 2 * b_t * s_t * itemsize            # mask stream
               + 2 * (H * C + C + b_t + b_t * C) * 4 # weight/bias/counts/out
               + b_t * H * 4)                        # f32 accumulator scratch
    vmem_limit = min(48 * 1024 * 1024, max(32 * 1024 * 1024, int(working * 1.25)))

    kernel = functools.partial(_head_kernel, seq_len=S, s_tile=s_t)

    out = pl.pallas_call(
        kernel,
        out_shape=jax.ShapeDtypeStruct((B, 1, C), jnp.float32),
        grid_spec=pltpu.PrefetchScalarGridSpec(
            num_scalar_prefetch=0,
            grid=grid,
            in_specs=[
                pl.BlockSpec((b_t, s_t, H), lambda i, s: (i, s, 0)),
                pl.BlockSpec((b_t, 1, s_t), lambda i, s: (i, 0, s)),
                # Loop-invariant / per-batch-tile operands: constant index along
                # the S axis -> stay VMEM-resident across the reduction sweep.
                pl.BlockSpec((b_t, 1, 1), lambda i, s: (i, 0, 0)),
                pl.BlockSpec((H, C), lambda i, s: (0, 0)),
                pl.BlockSpec((1, C), lambda i, s: (0, 0)),
            ],
            out_specs=pl.BlockSpec((b_t, 1, C), lambda i, s: (i, 0, 0)),
            scratch_shapes=[
                pltpu.VMEM((b_t, H), jnp.float32),   # masked-sum accumulator
            ],
        ),
        compiler_params=pltpu.CompilerParams(
            dimension_semantics=("parallel", "arbitrary"),
            vmem_limit_bytes=vmem_limit),
    )(last_hidden_state, mask3, counts, weight, bias2d)

    return out.reshape(B, C)


def _reference_head(last_hidden_state, attention_mask, fc_weight, fc_bias):
    h32 = last_hidden_state.astype(jnp.float32)
    m32 = attention_mask.astype(jnp.float32)[:, :, None]
    mean = jnp.sum(h32 * m32, axis=1) / jnp.maximum(jnp.sum(m32, axis=1), 1e-9)
    logits = mean @ fc_weight + fc_bias
    return jax.nn.log_softmax(logits, axis=-1)


if __name__ == "__main__":
    key = jax.random.PRNGKey(0)
    NUM_CLASSES = 4

    # --- Test 1: small shapes consistent with the forward pass ----------------
    B, S, H = 2, 8, 32
    k_h, k_w, k_b, k_h2, k_m2 = jax.random.split(key, 5)

    last_hidden_state = jax.random.normal(
        k_h, (B, S, H), dtype=jnp.float32).astype(jnp.bfloat16)
    attention_mask = jnp.stack([
        jnp.ones((S,), jnp.float32),
        jnp.concatenate([jnp.ones((S // 2,), jnp.float32),
                         jnp.zeros((S - S // 2,), jnp.float32)]),
    ], axis=0)  # (B, S)
    fc_weight = 0.05 * jax.random.normal(k_w, (H, NUM_CLASSES), dtype=jnp.float32)
    fc_bias = 0.01 * jax.random.normal(k_b, (NUM_CLASSES,), dtype=jnp.float32)

    out = jax.block_until_ready(
        model_head(last_hidden_state, attention_mask, fc_weight, fc_bias))
    ref = _reference_head(last_hidden_state, attention_mask, fc_weight, fc_bias)

    assert out.shape == (B, NUM_CLASSES)
    assert bool(jnp.all(jnp.abs(jnp.sum(jnp.exp(out), axis=-1) - 1.0) < 1e-4))
    assert bool(jnp.all(jnp.abs(out - ref) < 1e-3))

    # --- Test 2: exercise ragged S tail + partial batch tail + multi-tile grid -
    B2, S2, H2 = 5, 320, 256           # s_tile=128 -> ragged last S-tile (320 = 2*128+64)
    lh2 = jax.random.normal(k_h2, (B2, S2, H2), dtype=jnp.float32).astype(jnp.bfloat16)
    lens = jnp.array([320, 200, 17, 1, 300], dtype=jnp.int32)
    mask2 = (jnp.arange(S2)[None, :] < lens[:, None]).astype(jnp.float32)
    w2 = 0.05 * jax.random.normal(k_w, (H2, NUM_CLASSES), dtype=jnp.float32)
    b2 = 0.01 * jax.random.normal(k_b, (NUM_CLASSES,), dtype=jnp.float32)

    out2 = jax.block_until_ready(model_head(lh2, mask2, w2, b2, s_tile=128))
    ref2 = _reference_head(lh2, mask2, w2, b2)

    assert out2.shape == (B2, NUM_CLASSES)
    assert bool(jnp.all(jnp.abs(jnp.sum(jnp.exp(out2), axis=-1) - 1.0) < 1e-4))
    assert bool(jnp.all(jnp.abs(out2 - ref2) < 1e-3))

    print("KERNEL_OK")
</pallas_src>

<mosaic_0001>
module attributes {stable_mosaic.version = 11 : i64} {
  func.func @_head_kernel(%arg0: i32, %arg1: i32, %arg2: memref<1x8x32xbf16, #tpu.memory_space<vmem>>, %arg3: memref<1x1x8xbf16, #tpu.memory_space<vmem>>, %arg4: memref<1x1x1xf32, #tpu.memory_space<vmem>>, %arg5: memref<32x4xf32, #tpu.memory_space<vmem>>, %arg6: memref<1x4xf32, #tpu.memory_space<vmem>>, %arg7: memref<1x1x4xf32, #tpu.memory_space<vmem>>, %arg8: memref<1x32xf32, #tpu.memory_space<vmem>>) attributes {dimension_semantics = [#tpu.dimension_semantics<parallel>, #tpu.dimension_semantics<arbitrary>], iteration_bounds = array<i64: 2, 1>, scalar_prefetch = 0 : i64, scratch_operands = 1 : i64, tpu.core_type = #tpu.core_type<tc>, window_params = [{transform_indices = @transform_0, window_bounds = array<i64: 1, 8, 32>}, {transform_indices = @transform_1, window_bounds = array<i64: 1, 1, 8>}, {transform_indices = @transform_2, window_bounds = array<i64: 1, 1, 1>}, {pipeline_mode = #tpu.pipeline_mode<synchronous>, transform_indices = @transform_3, window_bounds = array<i64: 32, 4>}, {pipeline_mode = #tpu.pipeline_mode<synchronous>, transform_indices = @transform_4, window_bounds = array<i64: 1, 4>}, {transform_indices = @transform_5, window_bounds = array<i64: 1, 1, 4>}]} {
    %c0_i32 = arith.constant 0 : i32
    %0 = arith.cmpi eq, %arg1, %c0_i32 : i32
    %1 = arith.extui %0 : i1 to i32
    %c0_i32_0 = arith.constant 0 : i32
    %2 = arith.cmpi ne, %1, %c0_i32_0 : i32
    scf.if %2 {
      %cst_12 = arith.constant 0.000000e+00 : f32
      %13 = vector.broadcast %cst_12 : f32 to vector<1x32xf32>
      %c0_13 = arith.constant 0 : index
      %c0_14 = arith.constant 0 : index
      %14 = vector.load %arg8[%c0_13, %c0_14] : memref<1x32xf32, #tpu.memory_space<vmem>>, vector<1x32xf32>
      tpu.vector_store %arg8[%c0_13, %c0_14], %13 {strides = array<i32>} : memref<1x32xf32, #tpu.memory_space<vmem>>, vector<1x32xf32>,
    } else {
    }
    %c0 = arith.constant 0 : index
    %c0_1 = arith.constant 0 : index
    %c0_2 = arith.constant 0 : index
    %3 = vector.load %arg2[%c0, %c0_1, %c0_2] : memref<1x8x32xbf16, #tpu.memory_space<vmem>>, vector<1x8x32xbf16>
    %c0_3 = arith.constant 0 : index
    %c0_4 = arith.constant 0 : index
    %c0_5 = arith.constant 0 : index
    %4 = vector.load %arg3[%c0_3, %c0_4, %c0_5] : memref<1x1x8xbf16, #tpu.memory_space<vmem>>, vector<1x1x8xbf16>
    %c0_6 = arith.constant 0 : index
    %c0_7 = arith.constant 0 : index
    %5 = vector.load %arg8[%c0_6, %c0_7] : memref<1x32xf32, #tpu.memory_space<vmem>>, vector<1x32xf32>
    "tpu.trace_start"() <{level = 10 : i32, message = "bqs,bsh->bqh"}> : () -> ()
    %cst = arith.constant dense<0.000000e+00> : vector<1x1x32xf32>
    %6 = tpu.matmul %4, %3, %cst {dimension_numbers = #tpu.dot_dimension_numbers<[2], [1], [1], [2], [0, 0, 0, 1, 1, 2], [0], [0]>} : vector<1x1x8xbf16>, vector<1x8x32xbf16>, vector<1x1x32xf32> -> vector<1x1x32xf32>
    "tpu.trace_stop"() : () -> ()
    %7 = vector.shape_cast %6 : vector<1x1x32xf32> to vector<1x32xf32>
    %8 = arith.addf %5, %7 : vector<1x32xf32>
    %c0_8 = arith.constant 0 : index
    %c0_9 = arith.constant 0 : index
    %9 = vector.load %arg8[%c0_8, %c0_9] : memref<1x32xf32, #tpu.memory_space<vmem>>, vector<1x32xf32>
    tpu.vector_store %arg8[%c0_8, %c0_9], %8 {strides = array<i32>} : memref<1x32xf32, #tpu.memory_space<vmem>>, vector<1x32xf32>,
    %c0_i32_10 = arith.constant 0 : i32
    %10 = arith.cmpi eq, %arg1, %c0_i32_10 : i32
    %11 = arith.extui %10 : i1 to i32
    %c0_i32_11 = arith.constant 0 : i32
    %12 = arith.cmpi ne, %11, %c0_i32_11 : i32
    scf.if %12 {
      %c0_12 = arith.constant 0 : index
      %c0_13 = arith.constant 0 : index
      %c0_14 = arith.constant 0 : index
      %13 = vector.load %arg4[%c0_12, %c0_13, %c0_14] : memref<1x1x1xf32, #tpu.memory_space<vmem>>, vector<1x1x1xf32>
      %14 = vector.shape_cast %13 : vector<1x1x1xf32> to vector<1x1xf32>
      %cst_15 = arith.constant 9.99999971E-10 : f32
      %15 = vector.broadcast %cst_15 : f32 to vector<1x1xf32>
      %16 = arith.maximumf %14, %15 : vector<1x1xf32>
      %c0_16 = arith.constant 0 : index
      %c0_17 = arith.constant 0 : index
      %17 = vector.load %arg8[%c0_16, %c0_17] : memref<1x32xf32, #tpu.memory_space<vmem>>, vector<1x32xf32>
      %18 = vector.broadcast %16 : vector<1x1xf32> to vector<1x32xf32>
      %19 = arith.divf %17, %18 : vector<1x32xf32>
      %c0_18 = arith.constant 0 : index
      %c0_19 = arith.constant 0 : index
      %20 = vector.load %arg5[%c0_18, %c0_19] : memref<32x4xf32, #tpu.memory_space<vmem>>, vector<32x4xf32>
      %cst_20 = arith.constant dense<0.000000e+00> : vector<1x4xf32>
      %21 = tpu.matmul %19, %20, %cst_20 {dimension_numbers = #tpu.dot_dimension_numbers<[1], [0], [0], [1], [0, 0, 1, 1], [], []>} : vector<1x32xf32>, vector<32x4xf32>, vector<1x4xf32> -> vector<1x4xf32>
      %c0_21 = arith.constant 0 : index
      %c0_22 = arith.constant 0 : index
      %22 = vector.load %arg6[%c0_21, %c0_22] : memref<1x4xf32, #tpu.memory_space<vmem>>, vector<1x4xf32>
      %23 = arith.addf %21, %22 : vector<1x4xf32>
      %cst_23 = arith.constant dense<0xFF800000> : vector<1xf32>
      %24 = vector.multi_reduction <maximumf>, %23, %cst_23 [1] : vector<1x4xf32> to vector<1xf32>
      %25 = vector.shape_cast %24 : vector<1xf32> to vector<1x1xf32>
      %26 = vector.broadcast %25 : vector<1x1xf32> to vector<1x4xf32>
      %27 = arith.subf %23, %26 : vector<1x4xf32>
      %28 = math.exp %27 : vector<1x4xf32>
      %cst_24 = arith.constant dense<0.000000e+00> : vector<1xf32>
      %29 = vector.multi_reduction <add>, %28, %cst_24 [1] : vector<1x4xf32> to vector<1xf32>
      %30 = vector.shape_cast %29 : vector<1xf32> to vector<1x1xf32>
      %31 = math.log %30 : vector<1x1xf32>
      %32 = vector.broadcast %31 : vector<1x1xf32> to vector<1x4xf32>
      %33 = arith.subf %27, %32 : vector<1x4xf32>
      %34 = vector.shape_cast %33 : vector<1x4xf32> to vector<1x1x4xf32>
      %c0_25 = arith.constant 0 : index
      %c0_26 = arith.constant 0 : index
      %c0_27 = arith.constant 0 : index
      %35 = vector.load %arg7[%c0_25, %c0_26, %c0_27] : memref<1x1x4xf32, #tpu.memory_space<vmem>>, vector<1x1x4xf32>
      tpu.vector_store %arg7[%c0_25, %c0_26, %c0_27], %34 {strides = array<i32>} : memref<1x1x4xf32, #tpu.memory_space<vmem>>, vector<1x1x4xf32>,
    } else {
    }
    return
  }
  func.func @transform_0(%arg0: i32, %arg1: i32) -> (i32, i32, i32) {
    %c0_i32 = arith.constant 0 : i32
    %c0_i32_0 = arith.constant 0 : i32
    return %arg0, %arg1, %c0_i32 : i32, i32, i32
  }
  func.func @transform_1(%arg0: i32, %arg1: i32) -> (i32, i32, i32) {
    %c0_i32 = arith.constant 0 : i32
    %c0_i32_0 = arith.constant 0 : i32
    return %arg0, %c0_i32, %arg1 : i32, i32, i32
  }
  func.func @transform_2(%arg0: i32, %arg1: i32) -> (i32, i32, i32) {
    %c0_i32 = arith.constant 0 : i32
    %c0_i32_0 = arith.constant 0 : i32
    %c0_i32_1 = arith.constant 0 : i32
    return %arg0, %c0_i32, %c0_i32_0 : i32, i32, i32
  }
  func.func @transform_3(%arg0: i32, %arg1: i32) -> (i32, i32) {
    %c0_i32 = arith.constant 0 : i32
    %c0_i32_0 = arith.constant 0 : i32
    %c0_i32_1 = arith.constant 0 : i32
    return %c0_i32, %c0_i32_0 : i32, i32
  }
  func.func @transform_4(%arg0: i32, %arg1: i32) -> (i32, i32) {
    %c0_i32 = arith.constant 0 : i32
    %c0_i32_0 = arith.constant 0 : i32
    %c0_i32_1 = arith.constant 0 : i32
    return %c0_i32, %c0_i32_0 : i32, i32
  }
  func.func @transform_5(%arg0: i32, %arg1: i32) -> (i32, i32, i32) {
    %c0_i32 = arith.constant 0 : i32
    %c0_i32_0 = arith.constant 0 : i32
    %c0_i32_1 = arith.constant 0 : i32
    return %arg0, %c0_i32, %c0_i32_0 : i32, i32, i32
  }
}

</mosaic_0001>

<llo_original>
// kernel: tpu_custom_call.1
$region0: #{tpu_custom_call.1}
  #allocation0 [shape = 'u32[]', space=smem, size = 0x4, offset = 0x4, fixed_abs, tag = 'smem constant byte address 0x4 - core index']
  #allocation1 [shape = 'u32[144,128]{1,0:T(1,128)}', space=vmem, size = 0x12000, scoped, tag = 'internal scratch']
  #allocation2 [shape = 'f32[1,32]{1,0:T(1,128)}', space=vmem, size = 0x200, scoped, tag = 'scratch operand']
  %s0 = inlined_call_operand.vmem [shape: bf16[2,8,32], index: 0, kind: input, shape index: {}]
  %s1 = inlined_call_operand.vmem [shape: bf16[2,1,8], index: 1, kind: input, shape index: {}]
  %s2 = inlined_call_operand.vmem [shape: f32[2,1,1], index: 2, kind: input, shape index: {}]
  %s3 = inlined_call_operand.vmem [shape: f32[32,4], index: 3, kind: input, shape index: {}]
  %s4 = inlined_call_operand.vmem [shape: f32[1,4], index: 4, kind: input, shape index: {}]
  %s5 = inlined_call_operand.hbm [shape: f32[2,1,4], index: 5, kind: output, shape index: {}]
  %s6 = sld [smem:[#allocation0]]
  $region61: #{tpu_custom_call.1} parent=0
    _
  %s8 = ssub.s32 1, %s6
  %s9 = scalar_select 0, %s8, %s6
  $region1: #{tpu_custom_call.1} parent=0
    #allocation3 [shape = 'u8[1024]{0}', space=vmem, size = 0x400, scoped, tag = 'output window, operand 0']
    #allocation4 [shape = 's32[2]{0}', space=sflag, size = 0x8, scoped, tag = 'scoped memory for tpu_custom_call.1']
    %10 = vsyncpa [#allocation4], 0
    %s11 = scalar_lea.sflag [#allocation4], 1
    %12 = vsyncpa %s11, 0
    loop: start=0, step=1, limit=4
    $region2: #{tpu_custom_call.1} parent=1 // loop_pre_header
      _
    $region3: #{tpu_custom_call.1} parent=1 // loop_header
      %s14 = sphi 0, %s18
      %p15 = scmp.ge.s32.totalorder %s14, 4
      %s21 = sphi 0, %s33
      %s22 = sphi 0, %s29
      %s23 = sphi 0, %s21
      %s24 = sphi 0, %s22
      %s25 = sphi 0, %s23
      %s26 = sphi 0, %s24
      %s38 = sphi 0, %s40
      %s41 = sphi 0, %s38
      %s42 = sphi 0, %s41
      %s58 = sphi 0, %s42
      %s66 = sphi 0, %s68
      %s69 = sphi 0, %s66
      %s70 = sphi 0, %s69
      %s86 = sphi 0, %s70
      %s92 = sphi 0, %s94
      %s95 = sphi 0, %s92
      %s96 = sphi 0, %s95
      %s112 = sphi 0, %s96
      %s116 = sphi 0, %s116
      %s118 = sphi 0, %s116
      %s119 = sphi 0, %s118
      %s133 = sphi 0, %s119
      %s137 = sphi 0, %s137
      %s139 = sphi 0, %s137
      %s140 = sphi 0, %s139
      %s154 = sphi 0, %s140
      %s160 = sphi 0, %s162
      %s163 = sphi 0, %s160
      %s164 = sphi 0, %s163
      %s180 = sphi 0, %s164
    $region4: #{tpu_custom_call.1} parent=1 // loop_header_branch
      %17 = sbr.rel (%p15) target = $region8
    $region5: #{tpu_custom_call.1} parent=1 // loop_body
      %s19 = ssub.s32 %s14, 1
      %s20 = ssub.s32 %s14, 2
      %s27 = sadd.s32 1, %s22
      %p28 = scmp.ge.s32.totalorder %s27, 1
      %s29 = scalar_select %p28, 0, %s27
      %s30 = sadd.s32 1, %s21
      %s31 = scalar_select %p28, %s30, %s21
      %p32 = scmp.ge.s32.totalorder %s31, 2
      %s33 = scalar_select %p32, 0, %s31
      %s34 = ssub.s32 %s21, %s33
      %s35 = ssub.s32 %s22, %s29
      %s36 = sor.u32 %s34, %s35
      %p37 = scmp.eq.s32.totalorder %s36, 0
      %s39 = sadd.s32 %s38, 1
      %s40 = scalar_select %p37, %s38, %s39
      %p43 = pneg %p37
      %p44 = scmp.eq.s32.totalorder %s14, 1
      %p45 = por %p43, %p44
      %p46 = scmp.ne.s32.totalorder %s38, %s41
      %p47 = scmp.eq.s32.totalorder %s14, 0
      %p48 = por %p46, %p47
      %p49 = scmp.ne.s32.totalorder %s38, %s41
      %p50 = scmp.eq.s32.totalorder %s19, 1
      %p51 = por %p49, %p50
      %p52 = scmp.ne.s32.totalorder %s41, %s42
      %p53 = scmp.eq.s32.totalorder %s19, 0
      %p54 = por %p52, %p53
      %p55 = scmp.ne.s32.totalorder %s41, %s42
      %p56 = scmp.eq.s32.totalorder %s20, 1
      %p57 = por %p55, %p56
      %p59 = scmp.ne.s32.totalorder %s42, %s58
      %p60 = scmp.eq.s32.totalorder %s20, 0
      %p61 = por %p59, %p60
      %s62 = ssub.s32 %s21, %s33
      %s63 = ssub.s32 %s22, %s29
      %s64 = sor.u32 %s62, %s63
      %p65 = scmp.eq.s32.totalorder %s64, 0
      %s67 = sadd.s32 %s66, 1
      %s68 = scalar_select %p65, %s66, %s67
      %p71 = pneg %p65
      %p72 = scmp.eq.s32.totalorder %s14, 1
      %p73 = por %p71, %p72
      %p74 = scmp.ne.s32.totalorder %s66, %s69
      %p75 = scmp.eq.s32.totalorder %s14, 0
      %p76 = por %p74, %p75
      %p77 = scmp.ne.s32.totalorder %s66, %s69
      %p78 = scmp.eq.s32.totalorder %s19, 1
      %p79 = por %p77, %p78
      %p80 = scmp.ne.s32.totalorder %s69, %s70
      %p81 = scmp.eq.s32.totalorder %s19, 0
      %p82 = por %p80, %p81
      %p83 = scmp.ne.s32.totalorder %s69, %s70
      %p84 = scmp.eq.s32.totalorder %s20, 1
      %p85 = por %p83, %p84
      %p87 = scmp.ne.s32.totalorder %s70, %s86
      %p88 = scmp.eq.s32.totalorder %s20, 0
      %p89 = por %p87, %p88
      %s90 = ssub.s32 %s21, %s33
      %p91 = scmp.eq.s32.totalorder %s90, 0
      %s93 = sadd.s32 %s92, 1
      %s94 = scalar_select %p91, %s92, %s93
      %p97 = pneg %p91
      %p98 = scmp.eq.s32.totalorder %s14, 1
      %p99 = por %p97, %p98
      %p100 = scmp.ne.s32.totalorder %s92, %s95
      %p101 = scmp.eq.s32.totalorder %s14, 0
      %p102 = por %p100, %p101
      %p103 = scmp.ne.s32.totalorder %s92, %s95
      %p104 = scmp.eq.s32.totalorder %s19, 1
      %p105 = por %p103, %p104
      %p106 = scmp.ne.s32.totalorder %s95, %s96
      %p107 = scmp.eq.s32.totalorder %s19, 0
      %p108 = por %p106, %p107
      %p109 = scmp.ne.s32.totalorder %s95, %s96
      %p110 = scmp.eq.s32.totalorder %s20, 1
      %p111 = por %p109, %p110
      %p113 = scmp.ne.s32.totalorder %s96, %s112
      %p114 = scmp.eq.s32.totalorder %s20, 0
      %p115 = por %p113, %p114
      %s117 = sadd.s32 %s116, 1
      %p120 = scmp.eq.s32.totalorder %s14, 1
      %p121 = scmp.ne.s32.totalorder %s116, %s118
      %p122 = scmp.eq.s32.totalorder %s14, 0
      %p123 = por %p121, %p122
      %p124 = scmp.ne.s32.totalorder %s116, %s118
      %p125 = scmp.eq.s32.totalorder %s19, 1
      %p126 = por %p124, %p125
      %p127 = scmp.ne.s32.totalorder %s118, %s119
      %p128 = scmp.eq.s32.totalorder %s19, 0
      %p129 = por %p127, %p128
      %p130 = scmp.ne.s32.totalorder %s118, %s119
      %p131 = scmp.eq.s32.totalorder %s20, 1
      %p132 = por %p130, %p131
      %p134 = scmp.ne.s32.totalorder %s119, %s133
      %p135 = scmp.eq.s32.totalorder %s20, 0
      %p136 = por %p134, %p135
      %s138 = sadd.s32 %s137, 1
      %p141 = scmp.eq.s32.totalorder %s14, 1
      %p142 = scmp.ne.s32.totalorder %s137, %s139
      %p143 = scmp.eq.s32.totalorder %s14, 0
      %p144 = por %p142, %p143
      %p145 = scmp.ne.s32.totalorder %s137, %s139
      %p146 = scmp.eq.s32.totalorder %s19, 1
      %p147 = por %p145, %p146
      %p148 = scmp.ne.s32.totalorder %s139, %s140
      %p149 = scmp.eq.s32.totalorder %s19, 0
      %p150 = por %p148, %p149
      %p151 = scmp.ne.s32.totalorder %s139, %s140
      %p152 = scmp.eq.s32.totalorder %s20, 1
      %p153 = por %p151, %p152
      %p155 = scmp.ne.s32.totalorder %s140, %s154
      %p156 = scmp.eq.s32.totalorder %s20, 0
      %p157 = por %p155, %p156
      %s158 = ssub.s32 %s21, %s33
      %p159 = scmp.eq.s32.totalorder %s158, 0
      %s161 = sadd.s32 %s160, 1
      %s162 = scalar_select %p159, %s160, %s161
      %p165 = pneg %p159
      %p166 = scmp.eq.s32.totalorder %s14, 1
      %p167 = por %p165, %p166
      %p168 = scmp.ne.s32.totalorder %s160, %s163
      %p169 = scmp.eq.s32.totalorder %s14, 0
      %p170 = por %p168, %p169
      %p171 = scmp.ne.s32.totalorder %s160, %s163
      %p172 = scmp.eq.s32.totalorder %s19, 1
      %p173 = por %p171, %p172
      %p174 = scmp.ne.s32.totalorder %s163, %s164
      %p175 = scmp.eq.s32.totalorder %s19, 0
      %p176 = por %p174, %p175
      %p177 = scmp.ne.s32.totalorder %s163, %s164
      %p178 = scmp.eq.s32.totalorder %s20, 1
      %p179 = por %p177, %p178
      %p181 = scmp.ne.s32.totalorder %s164, %s180
      %p182 = scmp.eq.s32.totalorder %s20, 0
      %p183 = por %p181, %p182
      %p184 = scmp.le.s32.totalorder 1, %s14
      %p185 = scmp.lt.s32.totalorder %s14, 3
      %p186 = pnand %p184, %p185
      %p187 = pneg %p186
      // Predicated region
      $region9: #{tpu_custom_call.1} parent=5 // pred_check
        _
      $region10: #{tpu_custom_call.1} parent=5 // pred_check_branch
        %189 = sbr.rel (%p186) target = $region12
      $region11: #{tpu_custom_call.1} parent=5 // pred_region
        %s190 = ssub.s32 %s14, 1
        // Predicated region
        $region13: #{tpu_custom_call.1} parent=11 // pred_check
          %p191 = pneg %p129
        $region14: #{tpu_custom_call.1} parent=11 // pred_check_branch
          %193 = sbr.rel (%p191) target = $region16
        $region15: #{tpu_custom_call.1} parent=11 // pred_region
          _
        $region16: #{tpu_custom_call.1} parent=11 // pred_fallthru
          _
        // Predicated region
        $region17: #{tpu_custom_call.1} parent=11 // pred_check
          %p194 = pneg %p150
        $region18: #{tpu_custom_call.1} parent=11 // pred_check_branch
          %196 = sbr.rel (%p194) target = $region20
        $region19: #{tpu_custom_call.1} parent=11 // pred_region
          _
        $region20: #{tpu_custom_call.1} parent=11 // pred_fallthru
          _
      $region12: #{tpu_custom_call.1} parent=5 // pred_fallthru
        _
      %p197 = scmp.lt.s32.totalorder %s14, 2
      // Predicated region
      $region21: #{tpu_custom_call.1} parent=5 // pred_check
        %p198 = pneg %p197
      $region22: #{tpu_custom_call.1} parent=5 // pred_check_branch
        %200 = sbr.rel (%p198) target = $region24
      $region23: #{tpu_custom_call.1} parent=5 // pred_region
        // Predicated region
        $region25: #{tpu_custom_call.1} parent=23 // pred_check
          %p201 = pneg %p48
        $region26: #{tpu_custom_call.1} parent=23 // pred_check_branch
          %203 = sbr.rel (%p201) target = $region28
        $region27: #{tpu_custom_call.1} parent=23 // pred_region
          %p204 = scmp.lt.s32.totalorder %s21, 1
          %s205 = scalar_select %p204, %s21, 1
          %p206 = scmp.lt.s32.totalorder %s22, 0
          %s207 = scalar_select %p206, %s22, 0
          %s208 = sadd.s32 %s207, %s205
          %s209 = smul.addr %s208, 4
          %s210 = scalar_lea.vmem %s0, %s209
        $region28: #{tpu_custom_call.1} parent=23 // pred_fallthru
          _
        // Predicated region
        $region29: #{tpu_custom_call.1} parent=23 // pred_check
          %p211 = pneg %p76
        $region30: #{tpu_custom_call.1} parent=23 // pred_check_branch
          %213 = sbr.rel (%p211) target = $region32
        $region31: #{tpu_custom_call.1} parent=23 // pred_region
          %p214 = scmp.lt.s32.totalorder %s21, 1
          %s215 = scalar_select %p214, %s21, 1
          %p216 = scmp.lt.s32.totalorder %s22, 0
          %s217 = scalar_select %p216, %s22, 0
          %s218 = sadd.s32 %s217, %s215
          %s219 = scalar_lea.vmem %s1, %s218
        $region32: #{tpu_custom_call.1} parent=23 // pred_fallthru
          _
        // Predicated region
        $region33: #{tpu_custom_call.1} parent=23 // pred_check
          %p220 = pneg %p102
        $region34: #{tpu_custom_call.1} parent=23 // pred_check_branch
          %222 = sbr.rel (%p220) target = $region36
        $region35: #{tpu_custom_call.1} parent=23 // pred_region
          %p223 = scmp.lt.s32.totalorder %s21, 1
          %s224 = scalar_select %p223, %s21, 1
          %s225 = scalar_lea.vmem %s2, %s224
        $region36: #{tpu_custom_call.1} parent=23 // pred_fallthru
          _
      $region24: #{tpu_custom_call.1} parent=5 // pred_fallthru
        _
      %p226 = scmp.le.s32.totalorder 1, %s14
      %p227 = scmp.lt.s32.totalorder %s14, 3
      %p228 = pnand %p226, %p227
      %p229 = pneg %p228
      // Predicated region
      $region37: #{tpu_custom_call.1} parent=5 // pred_check
        _
      $region38: #{tpu_custom_call.1} parent=5 // pred_check_branch
        %231 = sbr.rel (%p228) target = $region40
      $region39: #{tpu_custom_call.1} parent=5 // pred_region
        %s232 = ssub.s32 %s14, 1
        %p233 = scmp.lt.s32.totalorder %s23, 1
        %s234 = scalar_select %p233, %s23, 1
        %p235 = scmp.lt.s32.totalorder %s24, 0
        %s236 = scalar_select %p235, %s24, 0
        %s237 = sadd.s32 %s236, %s234
        %s238 = smul.addr %s237, 4
        %s239 = scalar_lea.vmem %s0, %s238
        %p240 = pneg %p54
        %p241 = pneg %p51
        %p242 = scmp.lt.s32.totalorder %s23, 1
        %s243 = scalar_select %p242, %s23, 1
        %p244 = scmp.lt.s32.totalorder %s24, 0
        %s245 = scalar_select %p244, %s24, 0
        %s246 = sadd.s32 %s245, %s243
        %s247 = scalar_lea.vmem %s1, %s246
        %p248 = pneg %p82
        %p249 = pneg %p79
        %p250 = scmp.lt.s32.totalorder %s23, 1
        %s251 = scalar_select %p250, %s23, 1
        %s252 = scalar_lea.vmem %s2, %s251
        %p253 = pneg %p108
        %p254 = pneg %p105
        %p255 = pneg %p129
        %p256 = pneg %p126
        %p257 = pneg %p150
        %p258 = pneg %p147
        %p259 = pneg %p176
        %p260 = pneg %p173
        %s261 = sand.u32 %s163, 1
        %s262 = scalar_lea.sflag [#allocation4], %s261
        %s263 = sand.u32 %s163, 1
        %s264 = scalar_lea.vmem [#allocation3], %s263
        %p265 = scmp.lt.s32.totalorder %s23, 1
        %s266 = scalar_select %p265, %s23, 1
        %p267 = scmp.lt.s32.totalorder %s24, 0
        %s268 = scalar_select %p267, %s24, 0
        %s269 = sadd.s32 %s268, %s266
        %s270 = smul.addr %s269, 4
        %s271 = scalar_lea.vmem %s0, %s270
        %p272 = scmp.lt.s32.totalorder %s23, 1
        %s273 = scalar_select %p272, %s23, 1
        %p274 = scmp.lt.s32.totalorder %s24, 0
        %s275 = scalar_select %p274, %s24, 0
        %s276 = sadd.s32 %s275, %s273
        %s277 = scalar_lea.vmem %s1, %s276
        %p278 = scmp.lt.s32.totalorder %s23, 1
        %s279 = scalar_select %p278, %s23, 1
        %s280 = scalar_lea.vmem %s2, %s279
        %p282 = scmp.eq.s32.totalorder %s24, 0
        // Predicated region
        $region41: #{tpu_custom_call.1} parent=39 // pred_check
          %p283 = pneg %p282
        $region42: #{tpu_custom_call.1} parent=39 // pred_check_branch
          %285 = sbr.rel (%p283) target = $region44
        $region43: #{tpu_custom_call.1} parent=39 // pred_region
          %vm286 = vcmask 253952
          %287 = vst.msk [vmem:[#allocation2] sm:$0x1] %vm286, 0.0
        $region44: #{tpu_custom_call.1} parent=39 // pred_fallthru
          _
        %v288 = vld [vmem:[%s271] sm:$0xf]
        %v289 = vld [vmem:[%s277] sm:$0x1]
        %v290 = vld [vmem:[#allocation2] sm:$0x1]
        %vm291 = vcmask 64512
        %v293 = vsel %vm291, %v289, 0
        %vm295 = vcmask 1043456
        %v297 = vsel %vm295, %v288, 0
        %299 = vmatprep.subr.bf16.mxu0 0
        %300 = vmatpush1.bf16.msra.mxu0 %v297
        %301 = vmatprep.subr.bf16.mxu0 0
        %302 = vmatpush1.bf16.msra.mxu0 0
        %303 = vmatprep.subr.bf16.mxu0 0
        %304 = vmatpush1.bf16.msra.mxu0 0
        %305 = vmatprep.subr.bf16.mxu0 0
        %306 = vmatpush1.bf16.msra.mxu0 0
        %307 = vmatprep.subr.bf16.mxu0 0
        %308 = vmatpush1.bf16.msra.mxu0 0
        %309 = vmatprep.subr.bf16.mxu0 0
        %310 = vmatpush1.bf16.msra.mxu0 0
        %311 = vmatprep.subr.bf16.mxu0 0
        %312 = vmatpush1.bf16.msra.mxu0 0
        %313 = vmatprep.subr.bf16.mxu0 0
        %314 = vmatpush1.bf16.msra.mxu0 0
        %315 = vmatprep.subr.bf16.mxu0 0
        %316 = vmatpush1.bf16.msra.mxu0 0
        %317 = vmatprep.subr.bf16.mxu0 0
        %318 = vmatpush1.bf16.msra.mxu0 0
        %319 = vmatprep.subr.bf16.mxu0 0
        %320 = vmatpush1.bf16.msra.mxu0 0
        %321 = vmatprep.subr.bf16.mxu0 0
        %322 = vmatpush1.bf16.msra.mxu0 0
        %323 = vmatprep.subr.bf16.mxu0 0
        %324 = vmatpush1.bf16.msra.mxu0 0
        %325 = vmatprep.subr.bf16.mxu0 0
        %326 = vmatpush1.bf16.msra.mxu0 0
        %327 = vmatprep.subr.bf16.mxu0 0
        %328 = vmatpush1.bf16.msra.mxu0 0
        %329 = vmatprep.subr.bf16.mxu0 0
        %330 = vmatpush1.bf16.msra.mxu0 0
        %331 = vmatprep.mubr.bf16.mxu0 0
        %332 = vmatmul.mubr.bf16.gmra.mrb[0].mxu0 %v293
        %v333 = vpop.f32.mrb[0].mxu0
        %v334 = vadd.f32 0.0, %v333
        %v335 = vpop.f32.mrb[0].mxu0
        %v336 = vpop.f32.mrb[0].mxu0
        %v337 = vpop.f32.mrb[0].mxu0
        %338 = vdwg.mxu0
        %v339 = vadd.f32 %v290, %v334
        %vm340 = vcmask 253952
        %341 = vst.msk [vmem:[#allocation2] sm:$0x1] %vm340, %v339
        // Predicated region
        $region45: #{tpu_custom_call.1} parent=39 // pred_check
          %p342 = pneg %p282
        $region46: #{tpu_custom_call.1} parent=39 // pred_check_branch
          %344 = sbr.rel (%p342) target = $region48
        $region47: #{tpu_custom_call.1} parent=39 // pred_region
          %v345 = vld [vmem:[%s280] sm:$0x1]
          %v346 = vmax.f32 %v345, 1e-09
          %v347 = vld [vmem:[#allocation2] sm:$0x1]
          %349 = vset.pattern.permute.xlu0 0
          %350 = vperm.xlu0 %349, %v346
          %v351 = vpop.permute.xlu0 %350
          %v353 = vlaneseq
          %v354 = vshrl.u32 %v353, 7
          %v355 = vsub.s32 0, %v354
          %v356 = vrot.slane %v351, %v355
          %v357 = vrcp.pop %v356
          %v358 = vmul.f32 %v347, %v357
          %v359 = vld [vmem:[%s3] sm:$0xff]
          %v360 = vld [vmem:[%s3 + $0x8] sm:$0xff]
          %v361 = vld [vmem:[%s3 + $0x10] sm:$0xff]
          %v362 = vld [vmem:[%s3 + $0x18] sm:$0xff]
          %v363 = vld [vmem:[%s4] sm:$0x1]
          %vm364 = vcmask 261120
          %v366 = vsel %vm364, %v358, 0
          %368 = vmatprep.subr.mxu0 0.0
          %369 = vmatpush1.msra.mxu0 %v359
          %370 = vmatprep.subr.mxu0 0.0
          %371 = vmatpush1.msra.mxu0 %v360
          %372 = vmatprep.subr.mxu0 0.0
          %373 = vmatpush1.msra.mxu0 %v361
          %374 = vmatprep.subr.mxu0 0.0
          %375 = vmatpush1.msra.mxu0 %v362
          %376 = vmatprep.subr.mxu0 0.0
          %377 = vmatpush1.msra.mxu0 0.0
          %378 = vmatprep.subr.mxu0 0.0
          %379 = vmatpush1.msra.mxu0 0.0
          %380 = vmatprep.subr.mxu0 0.0
          %381 = vmatpush1.msra.mxu0 0.0
          %382 = vmatprep.subr.mxu0 0.0
          %383 = vmatpush1.msra.mxu0 0.0
          %384 = vmatprep.subr.mxu0 0.0
          %385 = vmatpush1.msra.mxu0 0.0
          %386 = vmatprep.subr.mxu0 0.0
          %387 = vmatpush1.msra.mxu0 0.0
          %388 = vmatprep.subr.mxu0 0.0
          %389 = vmatpush1.msra.mxu0 0.0
          %390 = vmatprep.subr.mxu0 0.0
          %391 = vmatpush1.msra.mxu0 0.0
          %392 = vmatprep.subr.mxu0 0.0
          %393 = vmatpush1.msra.mxu0 0.0
          %394 = vmatprep.subr.mxu0 0.0
          %395 = vmatpush1.msra.mxu0 0.0
          %396 = vmatprep.subr.mxu0 0.0
          %397 = vmatpush1.msra.mxu0 0.0
          %398 = vmatprep.subr.mxu0 0.0
          %399 = vmatpush1.msra.mxu0 0.0
          %400 = vmatprep.subr.mxu0 0.0
          %401 = vmatpush1.msra.mxu0 0.0
          %402 = vmatprep.subr.mxu0 0.0
          %403 = vmatpush1.msra.mxu0 0.0
          %404 = vmatprep.subr.mxu0 0.0
          %405 = vmatpush1.msra.mxu0 0.0
          %406 = vmatprep.subr.mxu0 0.0
          %407 = vmatpush1.msra.mxu0 0.0
          %408 = vmatprep.subr.mxu0 0.0
          %409 = vmatpush1.msra.mxu0 0.0
          %410 = vmatprep.subr.mxu0 0.0
          %411 = vmatpush1.msra.mxu0 0.0
          %412 = vmatprep.subr.mxu0 0.0
          %413 = vmatpush1.msra.mxu0 0.0
          %414 = vmatprep.subr.mxu0 0.0
          %415 = vmatpush1.msra.mxu0 0.0
          %416 = vmatprep.subr.mxu0 0.0
          %417 = vmatpush1.msra.mxu0 0.0
          %418 = vmatprep.subr.mxu0 0.0
          %419 = vmatpush1.msra.mxu0 0.0
          %420 = vmatprep.subr.mxu0 0.0
          %421 = vmatpush1.msra.mxu0 0.0
          %422 = vmatprep.subr.mxu0 0.0
          %423 = vmatpush1.msra.mxu0 0.0
          %424 = vmatprep.subr.mxu0 0.0
          %425 = vmatpush1.msra.mxu0 0.0
          %426 = vmatprep.subr.mxu0 0.0
          %427 = vmatpush1.msra.mxu0 0.0
          %428 = vmatprep.subr.mxu0 0.0
          %429 = vmatpush1.msra.mxu0 0.0
          %430 = vmatprep.subr.mxu0 0.0
          %431 = vmatpush1.msra.mxu0 0.0
          %432 = vmatprep.mubr.f32.mxu0 0.0
          %433 = vmatmul.mubr.f32.gmra.mrb[0].mxu0 %v366
          %v434 = vpop.f32.mrb[0].mxu0
          %v435 = vadd.f32 %v363, %v434
          %v436 = vpop.f32.mrb[0].mxu0
          %437 = vdwg.mxu0
          %vm438 = vcmask 24576
          %v439 = vsel %vm438, %v435, -inf
          %440 = vmax.xlane.f32.xlu0 %v439
          %v441 = vpop.xlane.xlu0 %440
          %v442 = vsub.f32 %v435, %v441
          %v443 = vmul.f32 %v442, 1.442695
          %v444 = vpow.pop %v443
          %v445 = vsel %vm438, %v444, 0.0
          %446 = vadd.xlane.f32.xlu0 %v445
          %v447 = vpop.xlane.xlu0 %446
          %v448 = vlog2.pop %v447
          %v449 = vmul.f32 %v448, 0.6931472
          %v450 = vsub.f32 %v442, %v449
          %451 = vst.msk [vmem:[%s264] sm:$0x1] %vm438, %v450
        $region48: #{tpu_custom_call.1} parent=39 // pred_fallthru
          _
        %s452 = sand.u32 %s163, 1
        %s453 = scalar_lea.sflag [#allocation4], %s452
        %s454 = sand.u32 %s163, 1
        %s455 = scalar_lea.vmem [#allocation3], %s454
        // Predicated region
        $region49: #{tpu_custom_call.1} parent=39 // pred_check
          %p456 = pneg %p173
        $region50: #{tpu_custom_call.1} parent=39 // pred_check_branch
          %458 = sbr.rel (%p456) target = $region52
        $region51: #{tpu_custom_call.1} parent=39 // pred_region
          %s460 = ssub.s32 16, 16
          %461 = vsyncadd %s453, %s460
          %s462 = smul.addr %s23, 16
          %s463 = scalar_lea.hbm %s5, %s462
          %s465 = sshll.u32 %s455, 4
          %s466 = int_to_ptr.vmem [resolvable:$true] %s465
          %468 = dma.vmem_to_hbm [thread:$0]  %s466, 16, %s463, %s453
        $region52: #{tpu_custom_call.1} parent=39 // pred_fallthru
          _
      $region40: #{tpu_custom_call.1} parent=5 // pred_fallthru
        _
      %p469 = scmp.le.s32.totalorder 2, %s14
      // Predicated region
      $region53: #{tpu_custom_call.1} parent=5 // pred_check
        %p470 = pneg %p469
      $region54: #{tpu_custom_call.1} parent=5 // pred_check_branch
        %472 = sbr.rel (%p470) target = $region56
      $region55: #{tpu_custom_call.1} parent=5 // pred_region
        %s473 = ssub.s32 %s14, 2
        // Predicated region
        $region57: #{tpu_custom_call.1} parent=55 // pred_check
          %p474 = pneg %p179
        $region58: #{tpu_custom_call.1} parent=55 // pred_check_branch
          %476 = sbr.rel (%p474) target = $region60
        $region59: #{tpu_custom_call.1} parent=55 // pred_region
          %s477 = sand.u32 %s164, 1
          %s478 = scalar_lea.sflag [#allocation4], %s477
          %s479 = sand.u32 %s164, 1
          %s480 = scalar_lea.vmem [#allocation3], %s479
          %481 = dma.done %s478, 16
        $region60: #{tpu_custom_call.1} parent=55 // pred_fallthru
          _
      $region56: #{tpu_custom_call.1} parent=5 // pred_fallthru
        _
    $region6: #{tpu_custom_call.1} parent=1 // loop_footer
      %s18 = sadd.s32 1, %s14
    $region7: #{tpu_custom_call.1} parent=1 // loop_footer_branch
      %13 = sbr.rel target = $region3
    $region8: #{tpu_custom_call.1} parent=1 // loop_exit
      _
    %482 = vsyncpa [#allocation4], 1
    %s483 = scalar_lea.sflag [#allocation4], 1
    %484 = vsyncpa %s483, 1

</llo_original>
